<compile_context>
chip_gen: v7x
topology: tpu7x:2x2x1
jax: 0.10.0
libtpu: 0.0.40
codegen_flags: <defaults>
</compile_context>

<pallas_src>
import functools
import math

import jax
import jax.numpy as jnp
from jax.experimental import pallas as pl
from jax.experimental.pallas import tpu as pltpu


# ---------------------------------------------------------------------------
# Per-generation tuning knobs.
# ---------------------------------------------------------------------------
def _tpu_config():
    vmem_cap = 64 * 1024 * 1024            # conservative default (v7x physical VMEM)
    try:
        vmem_cap = int(pltpu.get_tpu_info().vmem_capacity_bytes)
    except Exception:
        pass
    vmem_limit = (vmem_cap * 3) // 4       # ~48 MiB on v7x, ~96 MiB on v5e/v6e
    kind = ""
    try:
        kind = jax.devices()[0].device_kind.lower()
    except Exception:
        pass
    bf16_exp = ("v6" in kind) or ("v7" in kind)   # v5e has no bf16 EUP/VPU
    return vmem_limit, bf16_exp


def _choose_row_tile(n, row_bytes, budget, align=16):
    """Largest row tile (multiple of `align` dividing n, or n itself) whose
    double-buffered footprint stays under `budget` bytes."""
    target = budget // max(1, row_bytes)
    target = min(target, 1024, n)
    target -= target % align
    if target < align:
        target = align
    if n <= target:
        return n
    for t in range(target, align - 1, -align):
        if n % t == 0:
            return t
    for t in range(min(n, target), 7, -8):          # fallback: 8-aligned divisor
        if n % t == 0:
            return t
    return n                                        # last resort: whole axis per step


def _choose_q_tile(Lq, Lk, H, d, att_bytes, budget):
    """Largest Lq tile (divisor of Lq, 16-aligned or full) whose per-step
    attention working set (scores + probs + double-buffered atten output) fits."""
    def step_bytes(t):
        return H * t * (Lk * (4 + 2 + 2 * att_bytes) + d * 8)
    for t in range(Lq, 0, -1):
        if Lq % t == 0 and (t % 16 == 0 or t == Lq) and step_bytes(t) <= budget:
            return t
    for t in range(8, Lq + 1, 8):                   # nothing fits: smallest aligned tile
        if Lq % t == 0:
            return t
    return Lq


# ---------------------------------------------------------------------------
# Kernel 1: linear projection (bf16 MXU operands, f32 accumulate, bf16 out).
# grid = (batch, L-tile).  Called separately for Q (scale pre-folded), K, V.
# ---------------------------------------------------------------------------
def _linear_proj_kernel(x_ref, w_ref, b_ref, o_ref):
    x = x_ref[0].astype(jnp.bfloat16)                               # (TL, D)
    o = jnp.dot(x, w_ref[...], preferred_element_type=jnp.float32) + b_ref[...]
    o_ref[0] = o.astype(o_ref.dtype)


# ---------------------------------------------------------------------------
# Kernel 2: scaled dot-product attention, all heads of one batch element and
# one Lq tile per grid step.  Scores/softmax stats in f32, matmul operands bf16,
# exp optionally in bf16 (v6e/v7x), normalization via EUP reciprocal.
# ---------------------------------------------------------------------------
def _atten_kernel(q_ref, k_ref, v_ref, ctx_ref, att_ref, *, bf16_exp):
    q = q_ref[0]    # (H, TQ, d) bf16, already scaled by 1/sqrt(d)
    k = k_ref[0]    # (H, Lk, d) bf16
    v = v_ref[0]    # (H, Lk, d) bf16
    s = jnp.einsum("hqd,hkd->hqk", q, k, preferred_element_type=jnp.float32)
    s = s - jnp.max(s, axis=-1, keepdims=True)
    if bf16_exp:
        e = jnp.exp(s.astype(jnp.bfloat16))
        denom = jnp.sum(e, axis=-1, keepdims=True, dtype=jnp.float32)
        p = e * pl.reciprocal(denom, approx=True).astype(jnp.bfloat16)
        p_mm = p
    else:
        e = jnp.exp(s)
        denom = jnp.sum(e, axis=-1, keepdims=True)
        p = e * pl.reciprocal(denom, approx=True)
        p_mm = p.astype(jnp.bfloat16)
    att_ref[0] = p.astype(att_ref.dtype)
    ctx_ref[0] = jnp.einsum("hqk,hkd->hqd", p_mm, v,
                            preferred_element_type=jnp.float32).astype(ctx_ref.dtype)


# ---------------------------------------------------------------------------
# Kernel 3: final linear (bf16 MXU) + dropout(identity) + residual + LayerNorm.
# grid = (batch, Lq-tile).
# ---------------------------------------------------------------------------
def _final_kernel(ctx_ref, res_ref, wf_ref, bf_ref, g_ref, b_ref, out_ref, *, eps):
    ctx = ctx_ref[0]                                                # (TL, D) bf16
    o = jnp.dot(ctx, wf_ref[...], preferred_element_type=jnp.float32) + bf_ref[...]
    y = res_ref[0] + o                                              # residual in f32
    mu = jnp.mean(y, axis=-1, keepdims=True)
    var = jnp.mean((y - mu) ** 2, axis=-1, keepdims=True)
    yn = (y - mu) * jax.lax.rsqrt(var + eps)
    out_ref[0] = (yn * g_ref[...] + b_ref[...]).astype(out_ref.dtype)


# ---------------------------------------------------------------------------
# Wrapper
# ---------------------------------------------------------------------------
def multi_head_atten(query, key, value, params, *, num_heads=8,
                     atten_dtype=jnp.bfloat16):
    """query/key/value: (B, L, D) float32, D = model_dim = 2*encode_size.
    Returns (output (B, Lq, D) f32, atten (B*H, Lq, Lk) in `atten_dtype`)."""
    B, Lq, D = query.shape
    Lk = key.shape[1]
    H = num_heads
    assert D % H == 0, "model_dim must be divisible by num_heads"
    d = D // H
    scale = 1.0 / math.sqrt(d)

    f32, bf16 = jnp.float32, jnp.bfloat16
    vmem_limit, bf16_exp = _tpu_config()

    # Fold the 1/sqrt(d_k) attention scale into the Q projection (zero kernel cost).
    wq = (params["wq"] * scale).astype(bf16)
    bq = params["bq"] * scale
    wk = params["wk"].astype(bf16)
    wv = params["wv"].astype(bf16)
    wf = params["wf"].astype(bf16)
    bk, bv, bfin = params["bk"], params["bv"], params["bf"]

    cparams = pltpu.CompilerParams(dimension_semantics=("parallel", "parallel"),
                                   vmem_limit_bytes=vmem_limit)

    # Constant-index weights/biases: single-buffered -> one VMEM copy (not two).
    w_spec = pl.BlockSpec((D, D), lambda b, t: (0, 0), pipeline_mode=pl.Buffered(1))
    vec_spec = pl.BlockSpec((1, D), lambda b, t: (0, 0), pipeline_mode=pl.Buffered(1))

    # ---- Q/K/V projections: one pallas_call each (handles Lq != Lk, keeps only
    # ---- one (D, D) weight resident at a time) ------------------------------
    def project(x, w, b):
        Bx, Lx, _ = x.shape
        tl = _choose_row_tile(Lx, D * 12, vmem_limit // 4)
        nt = Lx // tl
        act_spec = pl.BlockSpec((1, tl, D), lambda bi, t: (bi, t, 0))
        cost = pl.CostEstimate(
            flops=2 * Bx * Lx * D * D,
            transcendentals=0,
            bytes_accessed=Bx * Lx * D * 6 + D * D * 2 + D * 4)
        return pl.pallas_call(
            _linear_proj_kernel,
            out_shape=jax.ShapeDtypeStruct((Bx, Lx, D), bf16),
            grid=(Bx, nt),
            in_specs=[act_spec, w_spec, vec_spec],
            out_specs=act_spec,
            compiler_params=cparams,
            cost_estimate=cost,
        )(x, w, b)

    q_p = project(query, wq, bq)
    k_p = project(key, wk, bk)
    v_p = project(value, wv, bv)

    # ---- raw reshape matching torch .view(B*H, -1, d) (no head transpose) ---
    # TODO(synk): when d = D/H < 128 this reshape is a relayout (lane dim padded
    # to 128) and per-head lane/MXU-depth utilization is d/128; fusing the head
    # split in-kernel needs Mosaic support for lane-splitting reshapes.
    q_h = jnp.reshape(q_p, (B, H, Lq, d))
    k_h = jnp.reshape(k_p, (B, H, Lk, d))
    v_h = jnp.reshape(v_p, (B, H, Lk, d))

    # ---- attention: all heads of one batch element, one Lq tile per step ----
    # TODO(synk): flash-style Lk tiling (online softmax) for very long Lk.
    att_bytes = jnp.dtype(atten_dtype).itemsize
    tq = _choose_q_tile(Lq, Lk, H, d, att_bytes, vmem_limit // 3)
    nq = Lq // tq

    q_spec = pl.BlockSpec((1, H, tq, d), lambda b, t: (b, 0, t, 0))
    kv_spec = pl.BlockSpec((1, H, Lk, d), lambda b, t: (b, 0, 0, 0))
    ctx_spec = pl.BlockSpec((1, H, tq, d), lambda b, t: (b, 0, t, 0))
    att_spec = pl.BlockSpec((1, H, tq, Lk), lambda b, t: (b, 0, t, 0))

    att_cost = pl.CostEstimate(
        flops=4 * B * H * Lq * Lk * d,
        transcendentals=B * H * Lq * Lk,
        bytes_accessed=(B * H * (Lq + 2 * Lk) * d * 2 + B * H * Lq * d * 2
                        + B * H * Lq * Lk * att_bytes))

    ctx_h, atten_h = pl.pallas_call(
        functools.partial(_atten_kernel, bf16_exp=bf16_exp),
        out_shape=(jax.ShapeDtypeStruct((B, H, Lq, d), bf16),
                   jax.ShapeDtypeStruct((B, H, Lq, Lk), atten_dtype)),
        grid=(B, nq),
        in_specs=[q_spec, kv_spec, kv_spec],
        out_specs=(ctx_spec, att_spec),
        compiler_params=cparams,
        cost_estimate=att_cost,
    )(q_h, k_h, v_h)

    # ---- raw reshape back, matching torch .view(B, -1, H*d) -----------------
    ctx = jnp.reshape(ctx_h, (B, Lq, D))
    atten = jnp.reshape(atten_h, (B * H, Lq, Lk))

    # ---- final linear + dropout(identity) + residual + LayerNorm ------------
    tl3 = _choose_row_tile(Lq, D * 20, vmem_limit // 4)
    nt3 = Lq // tl3
    act_spec3 = pl.BlockSpec((1, tl3, D), lambda b, t: (b, t, 0))
    fin_cost = pl.CostEstimate(
        flops=2 * B * Lq * D * D + 10 * B * Lq * D,
        transcendentals=B * Lq,
        bytes_accessed=B * Lq * D * 10 + D * D * 2 + 3 * D * 4)
    output = pl.pallas_call(
        functools.partial(_final_kernel, eps=1e-5),
        out_shape=jax.ShapeDtypeStruct((B, Lq, D), f32),
        grid=(B, nt3),
        in_specs=[act_spec3, act_spec3, w_spec, vec_spec, vec_spec, vec_spec],
        out_specs=act_spec3,
        compiler_params=cparams,
        cost_estimate=fin_cost,
    )(ctx, query, wf, bfin, params["ln_gamma"], params["ln_beta"])

    return output, atten


def init_params(key, model_dim):
    """Deterministic synthetic parameters. Linear weights stored pre-transposed
    as (in_dim, out_dim) so kernels compute x @ W + b (== torch x @ W.T + b)."""
    ks = jax.random.split(key, 8)
    s = 1.0 / jnp.sqrt(model_dim).astype(jnp.float32)
    mk = lambda k: jax.random.uniform(k, (model_dim, model_dim), jnp.float32, -s, s)
    bk = lambda k: jax.random.uniform(k, (1, model_dim), jnp.float32, -s, s)
    return {
        "wq": mk(ks[0]), "bq": bk(ks[1]),
        "wk": mk(ks[2]), "bk": bk(ks[3]),
        "wv": mk(ks[4]), "bv": bk(ks[5]),
        "wf": mk(ks[6]), "bf": bk(ks[7]),
        "ln_gamma": jnp.ones((1, model_dim), jnp.float32),
        "ln_beta": jnp.zeros((1, model_dim), jnp.float32),
    }


if __name__ == "__main__":
    # small shapes: batch=2, seq=8, encode_size=32 -> model_dim=64, heads=8, d_k=8
    B, L, ENC, H = 2, 8, 32, 8
    D = 2 * ENC

    root = jax.random.PRNGKey(0)
    kq, kk, kv, kp = jax.random.split(root, 4)
    query = jax.random.normal(kq, (B, L, D), jnp.float32)
    key = jax.random.normal(kk, (B, L, D), jnp.float32)
    value = jax.random.normal(kv, (B, L, D), jnp.float32)
    params = init_params(kp, D)

    out, atten = multi_head_atten(query, key, value, params, num_heads=H)
    jax.block_until_ready((out, atten))

    assert out.shape == (B, L, D)
    assert atten.shape == (B * H, L, L)
    print("KERNEL_OK")
</pallas_src>

<mosaic_0001>
module attributes {stable_mosaic.version = 11 : i64} {
  func.func @_linear_proj_kernel(%arg0: i32, %arg1: i32, %arg2: memref<1x8x64xf32, #tpu.memory_space<vmem>>, %arg3: memref<64x64xbf16, #tpu.memory_space<vmem>>, %arg4: memref<1x64xf32, #tpu.memory_space<vmem>>, %arg5: memref<1x8x64xbf16, #tpu.memory_space<vmem>>) attributes {dimension_semantics = [#tpu.dimension_semantics<parallel>, #tpu.dimension_semantics<parallel>], iteration_bounds = array<i64: 2, 1>, scalar_prefetch = 0 : i64, scratch_operands = 0 : i64, tpu.core_type = #tpu.core_type<tc>, window_params = [{transform_indices = @transform_0, window_bounds = array<i64: 1, 8, 64>}, {pipeline_mode = #tpu.pipeline_mode<synchronous>, transform_indices = @transform_1, window_bounds = array<i64: 64, 64>}, {pipeline_mode = #tpu.pipeline_mode<synchronous>, transform_indices = @transform_2, window_bounds = array<i64: 1, 64>}, {transform_indices = @transform_3, window_bounds = array<i64: 1, 8, 64>}]} {
    %c0 = arith.constant 0 : index
    %c0_0 = arith.constant 0 : index
    %c0_1 = arith.constant 0 : index
    %0 = vector.load %arg2[%c0, %c0_0, %c0_1] : memref<1x8x64xf32, #tpu.memory_space<vmem>>, vector<1x8x64xf32>
    %1 = vector.shape_cast %0 : vector<1x8x64xf32> to vector<8x64xf32>
    %2 = arith.truncf %1 : vector<8x64xf32> to vector<8x64xbf16>
    %c0_2 = arith.constant 0 : index
    %c0_3 = arith.constant 0 : index
    %3 = vector.load %arg3[%c0_2, %c0_3] : memref<64x64xbf16, #tpu.memory_space<vmem>>, vector<64x64xbf16>
    %cst = arith.constant dense<0.000000e+00> : vector<8x64xf32>
    %4 = tpu.matmul %2, %3, %cst {dimension_numbers = #tpu.dot_dimension_numbers<[1], [0], [0], [1], [0, 0, 1, 1], [], []>} : vector<8x64xbf16>, vector<64x64xbf16>, vector<8x64xf32> -> vector<8x64xf32>
    %c0_4 = arith.constant 0 : index
    %c0_5 = arith.constant 0 : index
    %5 = vector.load %arg4[%c0_4, %c0_5] : memref<1x64xf32, #tpu.memory_space<vmem>>, vector<1x64xf32>
    %6 = vector.broadcast %5 : vector<1x64xf32> to vector<8x64xf32>
    %7 = arith.addf %4, %6 : vector<8x64xf32>
    %8 = arith.truncf %7 : vector<8x64xf32> to vector<8x64xbf16>
    %c0_6 = arith.constant 0 : index
    %c0_7 = arith.constant 0 : index
    %c0_8 = arith.constant 0 : index
    %9 = vector.load %arg5[%c0_6, %c0_7, %c0_8] : memref<1x8x64xbf16, #tpu.memory_space<vmem>>, vector<1x8x64xbf16>
    %10 = vector.shape_cast %9 : vector<1x8x64xbf16> to vector<8x64xbf16>
    %11 = vector.shape_cast %8 : vector<8x64xbf16> to vector<1x8x64xbf16>
    tpu.vector_store %arg5[%c0_6, %c0_7, %c0_8], %11 {strides = array<i32>} : memref<1x8x64xbf16, #tpu.memory_space<vmem>>, vector<1x8x64xbf16>,
    return
  }
  func.func @transform_0(%arg0: i32, %arg1: i32) -> (i32, i32, i32) {
    %c0_i32 = arith.constant 0 : i32
    %c0_i32_0 = arith.constant 0 : i32
    return %arg0, %arg1, %c0_i32 : i32, i32, i32
  }
  func.func @transform_1(%arg0: i32, %arg1: i32) -> (i32, i32) {
    %c0_i32 = arith.constant 0 : i32
    %c0_i32_0 = arith.constant 0 : i32
    %c0_i32_1 = arith.constant 0 : i32
    return %c0_i32, %c0_i32_0 : i32, i32
  }
  func.func @transform_2(%arg0: i32, %arg1: i32) -> (i32, i32) {
    %c0_i32 = arith.constant 0 : i32
    %c0_i32_0 = arith.constant 0 : i32
    %c0_i32_1 = arith.constant 0 : i32
    return %c0_i32, %c0_i32_0 : i32, i32
  }
  func.func @transform_3(%arg0: i32, %arg1: i32) -> (i32, i32, i32) {
    %c0_i32 = arith.constant 0 : i32
    %c0_i32_0 = arith.constant 0 : i32
    return %arg0, %arg1, %c0_i32 : i32, i32, i32
  }
}

</mosaic_0001>

<llo_original>
// kernel: tpu_custom_call.1
$region0: #{tpu_custom_call.1}
  #allocation0 [shape = 'u32[]', space=smem, size = 0x4, offset = 0x4, fixed_abs, tag = 'smem constant byte address 0x4 - core index']
  #allocation1 [shape = 'u32[144,128]{1,0:T(1,128)}', space=vmem, size = 0x12000, scoped, tag = 'internal scratch']
  %s0 = inlined_call_operand.hbm [shape: f32[2,8,64], index: 0, kind: input, shape index: {}]
  %s1 = inlined_call_operand.hbm [shape: bf16[64,64], index: 1, kind: input, shape index: {}]
  %s2 = inlined_call_operand.vmem [shape: f32[1,64], index: 2, kind: input, shape index: {}]
  %s3 = inlined_call_operand.hbm [shape: bf16[2,8,64], index: 3, kind: output, shape index: {}]
  %s4 = sld [smem:[#allocation0]]
  $region53: #{tpu_custom_call.1} parent=0
    _
  %s6 = ssub.s32 1, %s4
  %s7 = scalar_select 0, %s6, %s4
  $region1: #{tpu_custom_call.1} parent=0
    #allocation2 [shape = 'u8[8192]{0}', space=vmem, size = 0x2000, scoped, tag = 'input window, operand 0']
    #allocation3 [shape = 's32[2]{0}', space=sflag, size = 0x8, scoped, tag = 'scoped memory for tpu_custom_call.1']
    #allocation4 [shape = 's32[2]{0}', space=sflag, size = 0x8, scoped, tag = 'scoped memory for tpu_custom_call.1']
    #allocation5 [shape = 'u8[16384]{0}', space=vmem, size = 0x4000, scoped, tag = 'input window, operand 1, single buffered']
    #allocation6 [shape = 's32[1]{0}', space=sflag, size = 0x4, scoped, tag = 'scoped memory for tpu_custom_call.1']
    #allocation7 [shape = 'u8[4096]{0}', space=vmem, size = 0x1000, scoped, tag = 'output window, operand 0']
    %8 = vsyncpa [#allocation3], 0
    %s9 = scalar_lea.sflag [#allocation3], 1
    %10 = vsyncpa %s9, 0
    %11 = vsyncpa [#allocation6], 0
    %12 = vsyncpa [#allocation4], 0
    %s13 = scalar_lea.sflag [#allocation4], 1
    %14 = vsyncpa %s13, 0
    loop: start=0, step=1, limit=4
    $region2: #{tpu_custom_call.1} parent=1 // loop_pre_header
      _
    $region3: #{tpu_custom_call.1} parent=1 // loop_header
      %s16 = sphi 0, %s20
      %p17 = scmp.ge.s32.totalorder %s16, 4
      %s23 = sphi 0, %s35
      %s24 = sphi 0, %s31
      %s25 = sphi 0, %s23
      %s26 = sphi 0, %s24
      %s27 = sphi 0, %s25
      %s28 = sphi 0, %s26
      %s40 = sphi 0, %s42
      %s43 = sphi 0, %s40
      %s44 = sphi 0, %s43
      %s60 = sphi 0, %s44
      %s64 = sphi 0, %s64
      %s66 = sphi 0, %s64
      %s67 = sphi 0, %s66
      %s81 = sphi 0, %s67
      %s85 = sphi 0, %s85
      %s87 = sphi 0, %s85
      %s88 = sphi 0, %s87
      %s102 = sphi 0, %s88
      %s110 = sphi 0, %s112
      %s113 = sphi 0, %s110
      %s114 = sphi 0, %s113
      %s130 = sphi 0, %s114
    $region4: #{tpu_custom_call.1} parent=1 // loop_header_branch
      %19 = sbr.rel (%p17) target = $region8
    $region5: #{tpu_custom_call.1} parent=1 // loop_body
      %s21 = ssub.s32 %s16, 1
      %s22 = ssub.s32 %s16, 2
      %s29 = sadd.s32 1, %s24
      %p30 = scmp.ge.s32.totalorder %s29, 1
      %s31 = scalar_select %p30, 0, %s29
      %s32 = sadd.s32 1, %s23
      %s33 = scalar_select %p30, %s32, %s23
      %p34 = scmp.ge.s32.totalorder %s33, 2
      %s35 = scalar_select %p34, 0, %s33
      %s36 = ssub.s32 %s23, %s35
      %s37 = ssub.s32 %s24, %s31
      %s38 = sor.u32 %s36, %s37
      %p39 = scmp.eq.s32.totalorder %s38, 0
      %s41 = sadd.s32 %s40, 1
      %s42 = scalar_select %p39, %s40, %s41
      %p45 = pneg %p39
      %p46 = scmp.eq.s32.totalorder %s16, 1
      %p47 = por %p45, %p46
      %p48 = scmp.ne.s32.totalorder %s40, %s43
      %p49 = scmp.eq.s32.totalorder %s16, 0
      %p50 = por %p48, %p49
      %p51 = scmp.ne.s32.totalorder %s40, %s43
      %p52 = scmp.eq.s32.totalorder %s21, 1
      %p53 = por %p51, %p52
      %p54 = scmp.ne.s32.totalorder %s43, %s44
      %p55 = scmp.eq.s32.totalorder %s21, 0
      %p56 = por %p54, %p55
      %p57 = scmp.ne.s32.totalorder %s43, %s44
      %p58 = scmp.eq.s32.totalorder %s22, 1
      %p59 = por %p57, %p58
      %p61 = scmp.ne.s32.totalorder %s44, %s60
      %p62 = scmp.eq.s32.totalorder %s22, 0
      %p63 = por %p61, %p62
      %s65 = sadd.s32 %s64, 1
      %p68 = scmp.eq.s32.totalorder %s16, 1
      %p69 = scmp.ne.s32.totalorder %s64, %s66
      %p70 = scmp.eq.s32.totalorder %s16, 0
      %p71 = por %p69, %p70
      %p72 = scmp.ne.s32.totalorder %s64, %s66
      %p73 = scmp.eq.s32.totalorder %s21, 1
      %p74 = por %p72, %p73
      %p75 = scmp.ne.s32.totalorder %s66, %s67
      %p76 = scmp.eq.s32.totalorder %s21, 0
      %p77 = por %p75, %p76
      %p78 = scmp.ne.s32.totalorder %s66, %s67
      %p79 = scmp.eq.s32.totalorder %s22, 1
      %p80 = por %p78, %p79
      %p82 = scmp.ne.s32.totalorder %s67, %s81
      %p83 = scmp.eq.s32.totalorder %s22, 0
      %p84 = por %p82, %p83
      %s86 = sadd.s32 %s85, 1
      %p89 = scmp.eq.s32.totalorder %s16, 1
      %p90 = scmp.ne.s32.totalorder %s85, %s87
      %p91 = scmp.eq.s32.totalorder %s16, 0
      %p92 = por %p90, %p91
      %p93 = scmp.ne.s32.totalorder %s85, %s87
      %p94 = scmp.eq.s32.totalorder %s21, 1
      %p95 = por %p93, %p94
      %p96 = scmp.ne.s32.totalorder %s87, %s88
      %p97 = scmp.eq.s32.totalorder %s21, 0
      %p98 = por %p96, %p97
      %p99 = scmp.ne.s32.totalorder %s87, %s88
      %p100 = scmp.eq.s32.totalorder %s22, 1
      %p101 = por %p99, %p100
      %p103 = scmp.ne.s32.totalorder %s88, %s102
      %p104 = scmp.eq.s32.totalorder %s22, 0
      %p105 = por %p103, %p104
      %s106 = ssub.s32 %s23, %s35
      %s107 = ssub.s32 %s24, %s31
      %s108 = sor.u32 %s106, %s107
      %p109 = scmp.eq.s32.totalorder %s108, 0
      %s111 = sadd.s32 %s110, 1
      %s112 = scalar_select %p109, %s110, %s111
      %p115 = pneg %p109
      %p116 = scmp.eq.s32.totalorder %s16, 1
      %p117 = por %p115, %p116
      %p118 = scmp.ne.s32.totalorder %s110, %s113
      %p119 = scmp.eq.s32.totalorder %s16, 0
      %p120 = por %p118, %p119
      %p121 = scmp.ne.s32.totalorder %s110, %s113
      %p122 = scmp.eq.s32.totalorder %s21, 1
      %p123 = por %p121, %p122
      %p124 = scmp.ne.s32.totalorder %s113, %s114
      %p125 = scmp.eq.s32.totalorder %s21, 0
      %p126 = por %p124, %p125
      %p127 = scmp.ne.s32.totalorder %s113, %s114
      %p128 = scmp.eq.s32.totalorder %s22, 1
      %p129 = por %p127, %p128
      %p131 = scmp.ne.s32.totalorder %s114, %s130
      %p132 = scmp.eq.s32.totalorder %s22, 0
      %p133 = por %p131, %p132
      %p134 = scmp.le.s32.totalorder 1, %s16
      %p135 = scmp.lt.s32.totalorder %s16, 3
      %p136 = pnand %p134, %p135
      %p137 = pneg %p136
      // Predicated region
      $region9: #{tpu_custom_call.1} parent=5 // pred_check
        _
      $region10: #{tpu_custom_call.1} parent=5 // pred_check_branch
        %139 = sbr.rel (%p136) target = $region12
      $region11: #{tpu_custom_call.1} parent=5 // pred_region
        %s140 = ssub.s32 %s16, 1
        // Predicated region
        $region13: #{tpu_custom_call.1} parent=11 // pred_check
          %p141 = pneg %p77
        $region14: #{tpu_custom_call.1} parent=11 // pred_check_branch
          %143 = sbr.rel (%p141) target = $region16
        $region15: #{tpu_custom_call.1} parent=11 // pred_region
          %s145 = ssub.s32 512, 512
          %146 = vsyncadd [#allocation6], %s145
          %s147 = sshll.u32 [#allocation5], 4
          %s148 = int_to_ptr.vmem [resolvable:$true] %s147
          %153 = dma.hbm_to_vmem [thread:$0]  %s1, 512, %s148, [#allocation6], 64, 64, 4
        $region16: #{tpu_custom_call.1} parent=11 // pred_fallthru
          _
        // Predicated region
        $region17: #{tpu_custom_call.1} parent=11 // pred_check
          %p154 = pneg %p98
        $region18: #{tpu_custom_call.1} parent=11 // pred_check_branch
          %156 = sbr.rel (%p154) target = $region20
        $region19: #{tpu_custom_call.1} parent=11 // pred_region
          _
        $region20: #{tpu_custom_call.1} parent=11 // pred_fallthru
          _
      $region12: #{tpu_custom_call.1} parent=5 // pred_fallthru
        _
      %p157 = scmp.lt.s32.totalorder %s16, 2
      // Predicated region
      $region21: #{tpu_custom_call.1} parent=5 // pred_check
        %p158 = pneg %p157
      $region22: #{tpu_custom_call.1} parent=5 // pred_check_branch
        %160 = sbr.rel (%p158) target = $region24
      $region23: #{tpu_custom_call.1} parent=5 // pred_region
        // Predicated region
        $region25: #{tpu_custom_call.1} parent=23 // pred_check
          %p161 = pneg %p50
        $region26: #{tpu_custom_call.1} parent=23 // pred_check_branch
          %163 = sbr.rel (%p161) target = $region28
        $region27: #{tpu_custom_call.1} parent=23 // pred_region
          %s164 = sand.u32 %s40, 1
          %s165 = scalar_lea.sflag [#allocation3], %s164
          %s166 = sand.u32 %s40, 1
          %s167 = smul.addr %s166, 8
          %s168 = scalar_lea.vmem [#allocation2], %s167
          %s170 = ssub.s32 128, 128
          %171 = vsyncadd %s165, %s170
          %s172 = sadd.s32 %s24, %s23
          %s173 = smul.addr %s172, 128
          %s174 = scalar_lea.hbm %s0, %s173
          %s176 = sshll.u32 %s168, 4
          %s177 = int_to_ptr.vmem [resolvable:$true] %s176
          %179 = dma.hbm_to_vmem [thread:$0]  %s174, 128, %s177, %s165
        $region28: #{tpu_custom_call.1} parent=23 // pred_fallthru
          _
      $region24: #{tpu_custom_call.1} parent=5 // pred_fallthru
        _
      %p180 = scmp.le.s32.totalorder 1, %s16
      %p181 = scmp.lt.s32.totalorder %s16, 3
      %p182 = pnand %p180, %p181
      %p183 = pneg %p182
      // Predicated region
      $region29: #{tpu_custom_call.1} parent=5 // pred_check
        _
      $region30: #{tpu_custom_call.1} parent=5 // pred_check_branch
        %185 = sbr.rel (%p182) target = $region32
      $region31: #{tpu_custom_call.1} parent=5 // pred_region
        %s186 = ssub.s32 %s16, 1
        %s187 = sand.u32 %s43, 1
        %s188 = scalar_lea.sflag [#allocation3], %s187
        %s189 = sand.u32 %s43, 1
        %s190 = smul.addr %s189, 8
        %s191 = scalar_lea.vmem [#allocation2], %s190
        // Predicated region
        $region33: #{tpu_custom_call.1} parent=31 // pred_check
          %p192 = pneg %p56
        $region34: #{tpu_custom_call.1} parent=31 // pred_check_branch
          %194 = sbr.rel (%p192) target = $region36
        $region35: #{tpu_custom_call.1} parent=31 // pred_region
          %195 = dma.done %s188, 128
        $region36: #{tpu_custom_call.1} parent=31 // pred_fallthru
          _
        // Predicated region
        $region37: #{tpu_custom_call.1} parent=31 // pred_check
          %p196 = pneg %p77
        $region38: #{tpu_custom_call.1} parent=31 // pred_check_branch
          %198 = sbr.rel (%p196) target = $region40
        $region39: #{tpu_custom_call.1} parent=31 // pred_region
          %199 = dma.done [#allocation6], 512
        $region40: #{tpu_custom_call.1} parent=31 // pred_fallthru
          _
        %s200 = sand.u32 %s43, 1
        %s201 = scalar_lea.sflag [#allocation3], %s200
        %s202 = sand.u32 %s43, 1
        %s203 = smul.addr %s202, 8
        %s204 = scalar_lea.vmem [#allocation2], %s203
        %p205 = pneg %p56
        %p206 = pneg %p53
        %p207 = pneg %p77
        %p208 = pneg %p74
        %p209 = pneg %p98
        %p210 = pneg %p95
        %p211 = pneg %p126
        %p212 = pneg %p123
        %s213 = sand.u32 %s113, 1
        %s214 = scalar_lea.sflag [#allocation4], %s213
        %s215 = sand.u32 %s113, 1
        %s216 = smul.addr %s215, 4
        %s217 = scalar_lea.vmem [#allocation7], %s216
        %v219 = vld [vmem:[%s191] sm:$0xff]
        %v220 = vpack.c.bf16 %v219, %v219
        %v221 = vld [vmem:[#allocation5] sm:$0xf]
        %v222 = vld [vmem:[#allocation5 + $0x4] sm:$0xf]
        %v223 = vld [vmem:[#allocation5 + $0x8] sm:$0xf]
        %v224 = vld [vmem:[#allocation5 + $0xc] sm:$0xf]
        %v225 = vld [vmem:[#allocation5 + $0x10] sm:$0xf]
        %v226 = vld [vmem:[#allocation5 + $0x14] sm:$0xf]
        %v227 = vld [vmem:[#allocation5 + $0x18] sm:$0xf]
        %v228 = vld [vmem:[#allocation5 + $0x1c] sm:$0xf]
        %v229 = vld [vmem:[%s2] sm:$0x1]
        %v231 = vlaneseq
        %v232 = vshrl.u32 %v231, 7
        %v233 = vsub.s32 0, %v232
        %v234 = vrot.slane %v229, %v233
        %v244 = vunpack.c.l.b16 %v221
        %v245 = vunpack.c.l.b16 %v222
        %v246 = vunpack.c.l.b16 %v223
        %v247 = vunpack.c.l.b16 %v224
        %v248 = vunpack.c.l.b16 %v225
        %v249 = vunpack.c.l.b16 %v226
        %v250 = vunpack.c.l.b16 %v227
        %v251 = vunpack.c.l.b16 %v228
        %v252 = vpack.c.b16 %v245, %v244
        %v253 = vpack.c.b16 %v247, %v246
        %v254 = vpack.c.b16 %v249, %v248
        %v255 = vpack.c.b16 %v251, %v250
        %vm260 = vcmask 523264
        %v262 = vsel %vm260, %v220, 0
        %264 = vmatprep.subr.bf16.mxu0 0
        %265 = vmatpush1.bf16.msra.mxu0 %v252
        %266 = vmatprep.subr.bf16.mxu0 0
        %267 = vmatpush1.bf16.msra.mxu0 %v253
        %268 = vmatprep.subr.bf16.mxu0 0
        %269 = vmatpush1.bf16.msra.mxu0 %v254
        %270 = vmatprep.subr.bf16.mxu0 0
        %271 = vmatpush1.bf16.msra.mxu0 %v255
        %272 = vmatprep.subr.bf16.mxu0 0
        %273 = vmatpush1.bf16.msra.mxu0 0
        %274 = vmatprep.subr.bf16.mxu0 0
        %275 = vmatpush1.bf16.msra.mxu0 0
        %276 = vmatprep.subr.bf16.mxu0 0
        %277 = vmatpush1.bf16.msra.mxu0 0
        %278 = vmatprep.subr.bf16.mxu0 0
        %279 = vmatpush1.bf16.msra.mxu0 0
        %280 = vmatprep.subr.bf16.mxu0 0
        %281 = vmatpush1.bf16.msra.mxu0 0
        %282 = vmatprep.subr.bf16.mxu0 0
        %283 = vmatpush1.bf16.msra.mxu0 0
        %284 = vmatprep.subr.bf16.mxu0 0
        %285 = vmatpush1.bf16.msra.mxu0 0
        %286 = vmatprep.subr.bf16.mxu0 0
        %287 = vmatpush1.bf16.msra.mxu0 0
        %288 = vmatprep.subr.bf16.mxu0 0
        %289 = vmatpush1.bf16.msra.mxu0 0
        %290 = vmatprep.subr.bf16.mxu0 0
        %291 = vmatpush1.bf16.msra.mxu0 0
        %292 = vmatprep.subr.bf16.mxu0 0
        %293 = vmatpush1.bf16.msra.mxu0 0
        %294 = vmatprep.subr.bf16.mxu0 0
        %295 = vmatpush1.bf16.msra.mxu0 0
        %296 = vmatprep.mubr.bf16.mxu0 0
        %297 = vmatmul.mubr.bf16.gmra.mrb[0].mxu0 %v262
        %v298 = vpop.f32.mrb[0].mxu0
        %v299 = vadd.f32 %v234, %v298
        %v300 = vpop.f32.mrb[0].mxu0
        %v301 = vpop.f32.mrb[0].mxu0
        %v302 = vpop.f32.mrb[0].mxu0
        %303 = vdwg.mxu0
        %v304 = vpack.c.bf16 %v299, %v299
        %vm305 = vcmask 519168
        %306 = vst.msk [vmem:[%s217] sm:$0xf] %vm305, %v304
        %s307 = sand.u32 %s113, 1
        %s308 = scalar_lea.sflag [#allocation4], %s307
        %s309 = sand.u32 %s113, 1
        %s310 = smul.addr %s309, 4
        %s311 = scalar_lea.vmem [#allocation7], %s310
        // Predicated region
        $region41: #{tpu_custom_call.1} parent=31 // pred_check
          %p312 = pneg %p123
        $region42: #{tpu_custom_call.1} parent=31 // pred_check_branch
          %314 = sbr.rel (%p312) target = $region44
        $region43: #{tpu_custom_call.1} parent=31 // pred_region
          %s316 = ssub.s32 64, 64
          %317 = vsyncadd %s308, %s316
          %s318 = sadd.s32 %s26, %s25
          %s319 = smul.addr %s318, 64
          %s320 = scalar_lea.hbm %s3, %s319
          %s322 = sshll.u32 %s311, 4
          %s323 = int_to_ptr.vmem [resolvable:$true] %s322
          %325 = dma.vmem_to_hbm [thread:$0]  %s323, 64, %s320, %s308
        $region44: #{tpu_custom_call.1} parent=31 // pred_fallthru
          _
      $region32: #{tpu_custom_call.1} parent=5 // pred_fallthru
        _
      %p326 = scmp.le.s32.totalorder 2, %s16
      // Predicated region
      $region45: #{tpu_custom_call.1} parent=5 // pred_check
        %p327 = pneg %p326
      $region46: #{tpu_custom_call.1} parent=5 // pred_check_branch
        %329 = sbr.rel (%p327) target = $region48
      $region47: #{tpu_custom_call.1} parent=5 // pred_region
        %s330 = ssub.s32 %s16, 2
        // Predicated region
        $region49: #{tpu_custom_call.1} parent=47 // pred_check
          %p331 = pneg %p129
        $region50: #{tpu_custom_call.1} parent=47 // pred_check_branch
          %333 = sbr.rel (%p331) target = $region52
        $region51: #{tpu_custom_call.1} parent=47 // pred_region
          %s334 = sand.u32 %s114, 1
          %s335 = scalar_lea.sflag [#allocation4], %s334
          %s336 = sand.u32 %s114, 1
          %s337 = smul.addr %s336, 4
          %s338 = scalar_lea.vmem [#allocation7], %s337
          %339 = dma.done %s335, 64
        $region52: #{tpu_custom_call.1} parent=47 // pred_fallthru
          _
      $region48: #{tpu_custom_call.1} parent=5 // pred_fallthru
        _
    $region6: #{tpu_custom_call.1} parent=1 // loop_footer
      %s20 = sadd.s32 1, %s16
    $region7: #{tpu_custom_call.1} parent=1 // loop_footer_branch
      %15 = sbr.rel target = $region3
    $region8: #{tpu_custom_call.1} parent=1 // loop_exit
      _
    %340 = vsyncpa [#allocation3], 1
    %s341 = scalar_lea.sflag [#allocation3], 1
    %342 = vsyncpa %s341, 1
    %343 = vsyncpa [#allocation6], 1
    %344 = vsyncpa [#allocation4], 1
    %s345 = scalar_lea.sflag [#allocation4], 1
    %346 = vsyncpa %s345, 1

</llo_original>
